<compile_context>
chip_gen: v7x
topology: tpu7x:2x2x1
jax: 0.10.0
libtpu: 0.0.40
codegen_flags: <defaults>
</compile_context>

<pallas_src>
import jax
import jax.numpy as jnp
import numpy as np
from jax import lax
from jax.experimental import pallas as pl
from jax.experimental.pallas import tpu as pltpu

# ------------------------- config (small, deterministic) -------------------------
B = 2
SEQ_LEN = 8
PRED_LEN = 4
D_MODEL = 32
T = SEQ_LEN + PRED_LEN          # cost_time length (seq_len + pred_len)
FEAT = SEQ_LEN * D_MODEL        # linear_en input features (256)
P2 = 2 * PRED_LEN               # interleaved pred lanes [ch0, ch1, ch0, ch1, ...]
WB_ROWS = FEAT + 8              # weight rows + sublane-padded bias row

NOMINAL_CAPACITY = 2.0
MAX_ED_IN_TRAIN = 3.0
MEAN = (0.5, 0.25)
STD = (1.5, 2.0)
LOWER_LIMIT = 0.0               # self.lower_limit (upper_limit is unused in forward)

# folded affine constants:  pred = OFF - K * A * ct**B
K0 = NOMINAL_CAPACITY / STD[0]
K1 = MAX_ED_IN_TRAIN / STD[1]
OFF0 = (NOMINAL_CAPACITY - MEAN[0]) / STD[0]
OFF1 = (MAX_ED_IN_TRAIN - MEAN[1]) / STD[1]


# ------------------------------ Pallas kernel ------------------------------------
def pi_kernel(enc_ref, wb_ref, ct_ref, slab_ref):
    # enc : (B, FEAT)
    # wb  : (FEAT+8, 4)  rows [0:FEAT) = W^T with columns ordered [A0, A1, B0, B1],
    #                    row FEAT = permuted bias (rows FEAT+1.. are zero padding)
    # ct  : (B, 2P)      last PRED_LEN cost_time steps, pairwise repeated [t0,t0,t1,t1,...]
    # slab: (B, 2P + 4)  lanes [0:2P) = interleaved pred, lanes [2P:2P+4) = [A0,A1,B0,B1]
    w = wb_ref[:FEAT, :]                           # (FEAT, 4) static, sublane-aligned view
    bias = wb_ref[FEAT:FEAT + 1, :]                # (1, 4)

    # one MXU matmul, no RHS relayout: (B, FEAT) x (FEAT, 4) contracting (1, 0)
    out = lax.dot_general(
        enc_ref[...], w,
        dimension_numbers=(((1,), (0,)), ((), ())),
        preferred_element_type=jnp.float32,
    ) + bias                                       # (B, 4) = [A0, A1, B0, B1]

    # Bs = max(Bs, lower_limit) -- clamp only the B columns (>= 2).
    cols = lax.broadcasted_iota(jnp.int32, out.shape, 1)
    ab = jnp.where(cols >= 2, jnp.maximum(out, LOWER_LIMIT), out)

    a0 = ab[:, 0:1]
    a1 = ab[:, 1:2]
    b0 = ab[:, 2:3]
    b1 = ab[:, 3:4]

    # per-lane channel parity for the interleaved pred slab
    odd = (lax.broadcasted_iota(jnp.int32, ct_ref.shape, 1) & 1) == 1     # (B, 2P)
    ka = jnp.where(odd, a1 * K1, a0 * K0)          # scale/std folded into A
    bb = jnp.where(odd, b1, b0)                    # clamped B per lane
    off = jnp.where(odd, OFF1, OFF0)               # (scale - mean)/std per lane

    # ct**B = exp(B*log(ct)); single log + single exp for both channels.
    # tiny floor guards log(0) -> NaN (cost_time is strictly positive in this workload).
    ct = jnp.maximum(ct_ref[...], 1e-30)
    pred = off - ka * jnp.exp(bb * jnp.log(ct))    # (B, 2P) interleaved

    slab_ref[:, :P2] = pred
    slab_ref[:, P2:] = ab


# ----------------------------- one-time param prep --------------------------------
def prepare_pi_params(W_en, b_en):
    """One-time layout prep (model init, NOT per call).
    torch Linear output cols are [A0, B0, A1, B1]; permute to [A0, A1, B0, B1],
    pre-transpose to (FEAT, 4), and append the permuted bias as row FEAT of a
    sublane-padded (FEAT+8, 4) slab so the kernel needs a single weight DMA."""
    perm = np.array([0, 2, 1, 3])
    wt = jnp.asarray(W_en, jnp.float32)[perm].T            # (FEAT, 4)
    bias = jnp.asarray(b_en, jnp.float32)[perm].reshape(1, 4)
    wb = jnp.zeros((WB_ROWS, 4), jnp.float32)
    wb = wb.at[:FEAT, :].set(wt)
    wb = wb.at[FEAT:FEAT + 1, :].set(bias)
    return wb


# --------------------------------- wrapper ----------------------------------------
def pi_info_encoder_forward(enc_out, cost_time, wb):
    """enc_out: (B, SEQ_LEN, D_MODEL), cost_time: (B, T), wb: prepare_pi_params output.
    Returns (pred[:, -PRED_LEN:, :], As, Bs) exactly like Model.forward
    (output_attention=False)."""
    Bsz = enc_out.shape[0]
    enc_flat = enc_out.reshape(Bsz, FEAT)

    # Only the last PRED_LEN steps are ever returned -> compute only those.
    # Pairwise repeat so the kernel writes pred already channel-interleaved.
    ct2 = jnp.repeat(cost_time[:, -PRED_LEN:], 2, axis=1)   # (B, 2P)

    vmem = lambda: pl.BlockSpec(memory_space=pltpu.MemorySpace.VMEM)

    slab = pl.pallas_call(
        pi_kernel,
        in_specs=[vmem(), vmem(), vmem()],
        out_specs=vmem(),
        out_shape=jax.ShapeDtypeStruct((Bsz, P2 + 4), jnp.float32),
    )(enc_flat, wb, ct2)

    # Free layout glue: pure reshape (no transpose) + slices.
    pred = slab[:, :P2].reshape(Bsz, PRED_LEN, 2)           # (B, PRED_LEN, 2)
    ab = slab[:, P2:]                                       # (B, 4) = [A0, A1, B0, B1]
    As = ab[:, None, 0:2]                                   # (B, 1, 2)
    Bs = ab[:, None, 2:4]                                   # (B, 1, 2) (clamped)
    return pred, As, Bs


# ----------------------------- pure-JAX reference --------------------------------
def ref_forward(enc_out, cost_time, W_en, b_en):
    out = enc_out.reshape(enc_out.shape[0], -1) @ W_en.T + b_en        # (B, 4)
    out = out.reshape(-1, 2, 2)
    As = out[:, :, 0][:, None, :]                                      # (B, 1, 2)
    Bs = out[:, :, 1][:, None, :]
    Bs = jnp.where(Bs < LOWER_LIMIT, LOWER_LIMIT, Bs)
    scale = jnp.array([NOMINAL_CAPACITY, MAX_ED_IN_TRAIN], jnp.float32)[None, None, :]
    ct = jnp.repeat(cost_time[:, :, None], 2, axis=-1)                 # (B, T, 2)
    pred = (1.0 - As * jnp.power(ct, Bs)) * scale
    means = jnp.array(MEAN, jnp.float32)[None, None, :]
    stds = jnp.array(STD, jnp.float32)[None, None, :]
    pred = (pred - means) / stds
    return pred[:, -PRED_LEN:, :], As, Bs


# ----------------------------------- main -----------------------------------------
if __name__ == "__main__":
    key = jax.random.PRNGKey(0)
    k_enc, k_ct, k_w, k_b = jax.random.split(key, 4)

    # encoder output (stand-in for enc_embedding + Informer encoder, see TODO above)
    enc_out = jax.random.normal(k_enc, (B, SEQ_LEN, D_MODEL), dtype=jnp.float32)
    # strictly positive "times" so pow()/log() are well-defined, as in the real use case
    cost_time = jax.random.uniform(k_ct, (B, T), dtype=jnp.float32, minval=0.1, maxval=5.0)

    # linear_en parameters: xavier_normal_ weight; small nonzero bias to exercise the
    # bias path (the module's weight_init uses zero bias, which is a special case of this)
    xavier_std = float(np.sqrt(2.0 / (FEAT + 4)))
    W_en = jax.random.normal(k_w, (4, FEAT), dtype=jnp.float32) * xavier_std
    b_en = jax.random.normal(k_b, (4,), dtype=jnp.float32) * 0.05

    wb = prepare_pi_params(W_en, b_en)          # one-time, outside the per-call path

    fwd = jax.jit(pi_info_encoder_forward)
    pred, As, Bs = jax.block_until_ready(fwd(enc_out, cost_time, wb))

    pred_r, As_r, Bs_r = ref_forward(enc_out, cost_time, W_en, b_en)
    np.testing.assert_allclose(np.asarray(pred), np.asarray(pred_r), rtol=1e-4, atol=1e-5)
    np.testing.assert_allclose(np.asarray(As), np.asarray(As_r), rtol=1e-5, atol=1e-5)
    np.testing.assert_allclose(np.asarray(Bs), np.asarray(Bs_r), rtol=1e-5, atol=1e-5)

    print("KERNEL_OK")
</pallas_src>

<mosaic_0001>
module attributes {stable_mosaic.version = 11 : i64} {
  func.func @pi_kernel(%arg0: memref<2x256xf32, #tpu.memory_space<vmem>>, %arg1: memref<264x4xf32, #tpu.memory_space<vmem>>, %arg2: memref<2x8xf32, #tpu.memory_space<vmem>>, %arg3: memref<2x12xf32, #tpu.memory_space<vmem>>) attributes {dimension_semantics = [], scalar_prefetch = 0 : i64, scratch_operands = 0 : i64, tpu.core_type = #tpu.core_type<tc>} {
    %c0 = arith.constant 0 : index
    %c0_0 = arith.constant 0 : index
    %0 = vector.load %arg1[%c0, %c0_0] : memref<264x4xf32, #tpu.memory_space<vmem>>, vector<256x4xf32>
    %c256 = arith.constant 256 : index
    %c0_1 = arith.constant 0 : index
    %1 = vector.load %arg1[%c256, %c0_1] : memref<264x4xf32, #tpu.memory_space<vmem>>, vector<1x4xf32>
    %c0_2 = arith.constant 0 : index
    %c0_3 = arith.constant 0 : index
    %2 = vector.load %arg0[%c0_2, %c0_3] : memref<2x256xf32, #tpu.memory_space<vmem>>, vector<2x256xf32>
    %cst = arith.constant dense<0.000000e+00> : vector<2x4xf32>
    %3 = tpu.matmul %2, %0, %cst {dimension_numbers = #tpu.dot_dimension_numbers<[1], [0], [0], [1], [0, 0, 1, 1], [], []>} : vector<2x256xf32>, vector<256x4xf32>, vector<2x4xf32> -> vector<2x4xf32>
    %4 = vector.broadcast %1 : vector<1x4xf32> to vector<2x4xf32>
    %5 = arith.addf %3, %4 : vector<2x4xf32>
    %6 = tpu.iota {dimensions = array<i32: 1>} : vector<2x4xi32>
    %c2_i32 = arith.constant 2 : i32
    %7 = vector.broadcast %c2_i32 : i32 to vector<2x4xi32>
    %8 = arith.cmpi sge, %6, %7 : vector<2x4xi32>
    %cst_4 = arith.constant 0.000000e+00 : f32
    %9 = vector.broadcast %cst_4 : f32 to vector<2x4xf32>
    %10 = arith.maximumf %5, %9 : vector<2x4xf32>
    %11 = arith.select %8, %10, %5 : vector<2x4xi1>, vector<2x4xf32>
    %12 = vector.extract_strided_slice %11 {offsets = [0, 0], sizes = [2, 1], strides = [1, 1]} : vector<2x4xf32> to vector<2x1xf32>
    %13 = vector.extract_strided_slice %11 {offsets = [0, 1], sizes = [2, 1], strides = [1, 1]} : vector<2x4xf32> to vector<2x1xf32>
    %14 = vector.extract_strided_slice %11 {offsets = [0, 2], sizes = [2, 1], strides = [1, 1]} : vector<2x4xf32> to vector<2x1xf32>
    %15 = vector.extract_strided_slice %11 {offsets = [0, 3], sizes = [2, 1], strides = [1, 1]} : vector<2x4xf32> to vector<2x1xf32>
    %16 = tpu.iota {dimensions = array<i32: 1>} : vector<2x8xi32>
    %c1_i32 = arith.constant 1 : i32
    %17 = vector.broadcast %c1_i32 : i32 to vector<2x8xi32>
    %18 = arith.andi %16, %17 : vector<2x8xi32>
    %c1_i32_5 = arith.constant 1 : i32
    %19 = vector.broadcast %c1_i32_5 : i32 to vector<2x8xi32>
    %20 = arith.cmpi eq, %18, %19 : vector<2x8xi32>
    %cst_6 = arith.constant 1.500000e+00 : f32
    %21 = vector.broadcast %cst_6 : f32 to vector<2x1xf32>
    %22 = arith.mulf %13, %21 : vector<2x1xf32>
    %cst_7 = arith.constant 1.33333337 : f32
    %23 = vector.broadcast %cst_7 : f32 to vector<2x1xf32>
    %24 = arith.mulf %12, %23 : vector<2x1xf32>
    %25 = vector.shape_cast %22 : vector<2x1xf32> to vector<2x1xf32>
    %26 = vector.broadcast %25 : vector<2x1xf32> to vector<2x8xf32>
    %27 = vector.shape_cast %24 : vector<2x1xf32> to vector<2x1xf32>
    %28 = vector.broadcast %27 : vector<2x1xf32> to vector<2x8xf32>
    %29 = arith.select %20, %26, %28 : vector<2x8xi1>, vector<2x8xf32>
    %30 = vector.shape_cast %15 : vector<2x1xf32> to vector<2x1xf32>
    %31 = vector.broadcast %30 : vector<2x1xf32> to vector<2x8xf32>
    %32 = vector.shape_cast %14 : vector<2x1xf32> to vector<2x1xf32>
    %33 = vector.broadcast %32 : vector<2x1xf32> to vector<2x8xf32>
    %34 = arith.select %20, %31, %33 : vector<2x8xi1>, vector<2x8xf32>
    %cst_8 = arith.constant 1.375000e+00 : f32
    %cst_9 = arith.constant 1.000000e+00 : f32
    %35 = vector.broadcast %cst_8 : f32 to vector<2x8xf32>
    %36 = vector.broadcast %cst_9 : f32 to vector<2x8xf32>
    %37 = arith.select %20, %35, %36 : vector<2x8xi1>, vector<2x8xf32>
    %c0_10 = arith.constant 0 : index
    %c0_11 = arith.constant 0 : index
    %38 = vector.load %arg2[%c0_10, %c0_11] : memref<2x8xf32, #tpu.memory_space<vmem>>, vector<2x8xf32>
    %cst_12 = arith.constant 1.000000e-30 : f32
    %39 = vector.broadcast %cst_12 : f32 to vector<2x8xf32>
    %40 = arith.maximumf %38, %39 : vector<2x8xf32>
    %41 = math.log %40 : vector<2x8xf32>
    %42 = arith.mulf %34, %41 : vector<2x8xf32>
    %43 = math.exp %42 : vector<2x8xf32>
    %44 = arith.mulf %29, %43 : vector<2x8xf32>
    %45 = arith.subf %37, %44 : vector<2x8xf32>
    %c0_13 = arith.constant 0 : index
    %c0_14 = arith.constant 0 : index
    %46 = vector.load %arg3[%c0_13, %c0_14] : memref<2x12xf32, #tpu.memory_space<vmem>>, vector<2x8xf32>
    tpu.vector_store %arg3[%c0_13, %c0_14], %45 {strides = array<i32>} : memref<2x12xf32, #tpu.memory_space<vmem>>, vector<2x8xf32>,
    %c0_15 = arith.constant 0 : index
    %c8 = arith.constant 8 : index
    %47 = vector.load %arg3[%c0_15, %c8] : memref<2x12xf32, #tpu.memory_space<vmem>>, vector<2x4xf32>
    tpu.vector_store %arg3[%c0_15, %c8], %11 {strides = array<i32>} : memref<2x12xf32, #tpu.memory_space<vmem>>, vector<2x4xf32>,
    return
  }
}

</mosaic_0001>

<llo_original>
// kernel: pi_info_encoder_forward.1
$region0: #{pi_info_encoder_forward.1}
  #allocation0 [shape = 'u32[]', space=smem, size = 0x4, offset = 0x4, fixed_abs, tag = 'smem constant byte address 0x4 - core index']
  #allocation1 [shape = 'u32[144,128]{1,0:T(1,128)}', space=vmem, size = 0x12000, scoped, tag = 'internal scratch']
  %s0 = inlined_call_operand.vmem [shape: f32[2,256], index: 0, kind: input, shape index: {}]
  %s1 = inlined_call_operand.vmem [shape: f32[264,4], index: 1, kind: input, shape index: {}]
  %s2 = inlined_call_operand.vmem [shape: f32[2,8], index: 2, kind: input, shape index: {}]
  %s3 = inlined_call_operand.vmem [shape: f32[2,12], index: 3, kind: output, shape index: {}]
  %s4 = sld [smem:[#allocation0]]
  $region22: #{pi_info_encoder_forward.1} parent=0
    _
  %s6 = ssub.s32 1, %s4
  %s7 = scalar_select 0, %s6, %s4
  // Predicated region
  $region2: #{pi_info_encoder_forward.1} parent=0 // pred_check
    _
  $region3: #{pi_info_encoder_forward.1} parent=0 // pred_check_branch
    %9 = sbr.rel (0) target = $region5
  $region4: #{pi_info_encoder_forward.1} parent=0 // pred_region
    _
  $region5: #{pi_info_encoder_forward.1} parent=0 // pred_fallthru
    _
  // Predicated region
  $region6: #{pi_info_encoder_forward.1} parent=0 // pred_check
    _
  $region7: #{pi_info_encoder_forward.1} parent=0 // pred_check_branch
    %11 = sbr.rel (0) target = $region9
  $region8: #{pi_info_encoder_forward.1} parent=0 // pred_region
    _
  $region9: #{pi_info_encoder_forward.1} parent=0 // pred_fallthru
    _
  // Predicated region
  $region10: #{pi_info_encoder_forward.1} parent=0 // pred_check
    _
  $region11: #{pi_info_encoder_forward.1} parent=0 // pred_check_branch
    %13 = sbr.rel (0) target = $region13
  $region12: #{pi_info_encoder_forward.1} parent=0 // pred_region
    _
  $region13: #{pi_info_encoder_forward.1} parent=0 // pred_fallthru
    _
  %v14 = vld [vmem:[%s1] sm:$0xff]
  %v15 = vld [vmem:[%s1 + $0x8] sm:$0xff]
  %v16 = vld [vmem:[%s1 + $0x10] sm:$0xff]
  %v17 = vld [vmem:[%s1 + $0x18] sm:$0xff]
  %v18 = vld [vmem:[%s1 + $0x20] sm:$0xff]
  %v19 = vld [vmem:[%s1 + $0x28] sm:$0xff]
  %v20 = vld [vmem:[%s1 + $0x30] sm:$0xff]
  %v21 = vld [vmem:[%s1 + $0x38] sm:$0xff]
  %v22 = vld [vmem:[%s1 + $0x40] sm:$0xff]
  %v23 = vld [vmem:[%s1 + $0x48] sm:$0xff]
  %v24 = vld [vmem:[%s1 + $0x50] sm:$0xff]
  %v25 = vld [vmem:[%s1 + $0x58] sm:$0xff]
  %v26 = vld [vmem:[%s1 + $0x60] sm:$0xff]
  %v27 = vld [vmem:[%s1 + $0x68] sm:$0xff]
  %v28 = vld [vmem:[%s1 + $0x70] sm:$0xff]
  %v29 = vld [vmem:[%s1 + $0x78] sm:$0xff]
  %v30 = vld [vmem:[%s1 + $0x80] sm:$0xff]
  %v31 = vld [vmem:[%s1 + $0x88] sm:$0xff]
  %v32 = vld [vmem:[%s1 + $0x90] sm:$0xff]
  %v33 = vld [vmem:[%s1 + $0x98] sm:$0xff]
  %v34 = vld [vmem:[%s1 + $0xa0] sm:$0xff]
  %v35 = vld [vmem:[%s1 + $0xa8] sm:$0xff]
  %v36 = vld [vmem:[%s1 + $0xb0] sm:$0xff]
  %v37 = vld [vmem:[%s1 + $0xb8] sm:$0xff]
  %v38 = vld [vmem:[%s1 + $0xc0] sm:$0xff]
  %v39 = vld [vmem:[%s1 + $0xc8] sm:$0xff]
  %v40 = vld [vmem:[%s1 + $0xd0] sm:$0xff]
  %v41 = vld [vmem:[%s1 + $0xd8] sm:$0xff]
  %v42 = vld [vmem:[%s1 + $0xe0] sm:$0xff]
  %v43 = vld [vmem:[%s1 + $0xe8] sm:$0xff]
  %v44 = vld [vmem:[%s1 + $0xf0] sm:$0xff]
  %v45 = vld [vmem:[%s1 + $0xf8] sm:$0xff]
  %v46 = vld [vmem:[%s1 + $0x100] sm:$0x1]
  %v47 = vld [vmem:[%s0] sm:$0xf]
  %v48 = vlaneseq
  %v49 = vshrl.u32 %v48, 7
  %v50 = vsub.s32 0, %v49
  %v51 = vrot.slane %v46, %v50
  %v54 = vunpack.c.l.s4 1983009808
  %v55 = vunpack.c.0.s8 %v54
  %v56 = vlaneseq
  %v57 = vshrl.u32 %v56, 7
  %v58 = vsub.s32 %v55, %v57
  %v59 = vrot.slane %v47, %v58
  %v60 = vcombine.high %v59, %v59
  %63 = vmatprep.subr.mxu0 0.0
  %64 = vmatpush1.msra.mxu0 %v14
  %65 = vmatprep.subr.mxu0 0.0
  %66 = vmatpush1.msra.mxu0 %v15
  %67 = vmatprep.subr.mxu0 0.0
  %68 = vmatpush1.msra.mxu0 %v16
  %69 = vmatprep.subr.mxu0 0.0
  %70 = vmatpush1.msra.mxu0 %v17
  %71 = vmatprep.subr.mxu0 0.0
  %72 = vmatpush1.msra.mxu0 %v18
  %73 = vmatprep.subr.mxu0 0.0
  %74 = vmatpush1.msra.mxu0 %v19
  %75 = vmatprep.subr.mxu0 0.0
  %76 = vmatpush1.msra.mxu0 %v20
  %77 = vmatprep.subr.mxu0 0.0
  %78 = vmatpush1.msra.mxu0 %v21
  %79 = vmatprep.subr.mxu0 0.0
  %80 = vmatpush1.msra.mxu0 %v22
  %81 = vmatprep.subr.mxu0 0.0
  %82 = vmatpush1.msra.mxu0 %v23
  %83 = vmatprep.subr.mxu0 0.0
  %84 = vmatpush1.msra.mxu0 %v24
  %85 = vmatprep.subr.mxu0 0.0
  %86 = vmatpush1.msra.mxu0 %v25
  %87 = vmatprep.subr.mxu0 0.0
  %88 = vmatpush1.msra.mxu0 %v26
  %89 = vmatprep.subr.mxu0 0.0
  %90 = vmatpush1.msra.mxu0 %v27
  %91 = vmatprep.subr.mxu0 0.0
  %92 = vmatpush1.msra.mxu0 %v28
  %93 = vmatprep.subr.mxu0 0.0
  %94 = vmatpush1.msra.mxu0 %v29
  %95 = vmatprep.subr.mxu0 0.0
  %96 = vmatpush1.msra.mxu0 %v30
  %97 = vmatprep.subr.mxu0 0.0
  %98 = vmatpush1.msra.mxu0 %v31
  %99 = vmatprep.subr.mxu0 0.0
  %100 = vmatpush1.msra.mxu0 %v32
  %101 = vmatprep.subr.mxu0 0.0
  %102 = vmatpush1.msra.mxu0 %v33
  %103 = vmatprep.subr.mxu0 0.0
  %104 = vmatpush1.msra.mxu0 %v34
  %105 = vmatprep.subr.mxu0 0.0
  %106 = vmatpush1.msra.mxu0 %v35
  %107 = vmatprep.subr.mxu0 0.0
  %108 = vmatpush1.msra.mxu0 %v36
  %109 = vmatprep.subr.mxu0 0.0
  %110 = vmatpush1.msra.mxu0 %v37
  %111 = vmatprep.subr.mxu0 0.0
  %112 = vmatpush1.msra.mxu0 %v38
  %113 = vmatprep.subr.mxu0 0.0
  %114 = vmatpush1.msra.mxu0 %v39
  %115 = vmatprep.subr.mxu0 0.0
  %116 = vmatpush1.msra.mxu0 %v40
  %117 = vmatprep.subr.mxu0 0.0
  %118 = vmatpush1.msra.mxu0 %v41
  %119 = vmatprep.subr.mxu0 0.0
  %120 = vmatpush1.msra.mxu0 %v42
  %121 = vmatprep.subr.mxu0 0.0
  %122 = vmatpush1.msra.mxu0 %v43
  %123 = vmatprep.subr.mxu0 0.0
  %124 = vmatpush1.msra.mxu0 %v44
  %125 = vmatprep.subr.mxu0 0.0
  %126 = vmatpush1.msra.mxu0 %v45
  %127 = vmatprep.mubr.f32.mxu0 %v60
  %128 = vmatmul.mubr.f32.gmra.mrb[0].mxu0 %v59
  %v129 = vpop.f32.mrb[0].mxu0
  %v130 = vadd.f32 %v51, %v129
  %v131 = vpop.f32.mrb[0].mxu0
  %132 = vdwg.mxu0
  %v133 = vlaneseq
  %v134 = vand.u32 %v133, 127
  %vm135 = vcmp.ge.s32.totalorder %v134, 2
  %v136 = vmax.f32 %v130, 0.0
  %v137 = vsel %vm135, %v136, %v130
  %v138 = vand.u32 %v134, 1
  %vm139 = vcmp.eq.s32.totalorder %v138, 1
  %v140 = vmul.f32 %v137, 1.5
  %v141 = vmul.f32 %v137, 1.3333334
  %143 = vset.pattern.permute.xlu0 1
  %144 = vperm.xlu0 %143, %v140
  %v145 = vpop.permute.xlu0 %144
  %148 = vset.pattern.permute.xlu0 0
  %149 = vperm.xlu0 %148, %v141
  %v150 = vpop.permute.xlu0 %149
  %v152 = vsel %vm139, %v145, %v150
  %154 = vset.pattern.permute.xlu0 3
  %155 = vperm.xlu0 %154, %v137
  %v156 = vpop.permute.xlu0 %155
  %158 = vset.pattern.permute.xlu0 2
  %159 = vperm.xlu0 %158, %v137
  %v160 = vpop.permute.xlu0 %159
  %v162 = vsel %vm139, %v156, %v160
  %v163 = vsel %vm139, 1.375, 1.0
  %v164 = vld [vmem:[%s2] sm:$0x3]
  %v165 = vmax.f32 %v164, 1e-30
  %v166 = vlog2.pop %v165
  %v167 = vmul.f32 %v166, 0.6931472
  %v168 = vmul.f32 %v162, %v167
  %v169 = vmul.f32 %v168, 1.442695
  %v170 = vpow.pop %v169
  %v171 = vmul.f32 %v152, %v170
  %v172 = vsub.f32 %v163, %v171
  %vm173 = vcmask 58368
  %174 = vst.msk [vmem:[%s3] sm:$0x3] %vm173, %v172
  %175 = vrot.lane.b32.xlu0 %v137, 8
  %v176 = vpop.permute.xlu0 %175
  %vm178 = vcmask 91200
  %179 = vst.msk [vmem:[%s3] sm:$0x3] %vm178, %v176
  // Predicated region
  $region14: #{pi_info_encoder_forward.1} parent=0 // pred_check
    _
  $region15: #{pi_info_encoder_forward.1} parent=0 // pred_check_branch
    %181 = sbr.rel (0) target = $region17
  $region16: #{pi_info_encoder_forward.1} parent=0 // pred_region
    _
  $region17: #{pi_info_encoder_forward.1} parent=0 // pred_fallthru
    _
  // Predicated region
  $region18: #{pi_info_encoder_forward.1} parent=0 // pred_check
    _
  $region19: #{pi_info_encoder_forward.1} parent=0 // pred_check_branch
    %183 = sbr.rel (0) target = $region21
  $region20: #{pi_info_encoder_forward.1} parent=0 // pred_region
    _
  $region21: #{pi_info_encoder_forward.1} parent=0 // pred_fallthru
    _

</llo_original>
